<compile_context>
chip_gen: v5e
topology: v5e:2x2
jax: 0.10.0
libtpu: 0.0.40
codegen_flags: <defaults>
</compile_context>

<pallas_src>
import jax
import jax.numpy as jnp
from jax.experimental import pallas as pl
from jax.experimental.pallas import tpu as pltpu


LANE = 128          # TPU lane width (last dim of a vreg)
SUBLANE = 8         # TPU sublane count (second-to-last dim of a vreg)


def _round_up(x, m):
    return ((x + m - 1) // m) * m


# --------------------------------------------------------------------------
# Kernel: mean = x @ W_pad  (keep only real act columns) + b
#   x_ref    : [TB, F]        activations (batch-tiled)
#   w_ref    : [F, A_pad]     weight, lane-padded once per param update
#   b_ref    : [1, A]         bias (real columns only)
#   mean_ref : [TB, A]        output (real columns only -> no inflated store)
# --------------------------------------------------------------------------
def actor_mean_kernel(x_ref, w_ref, b_ref, mean_ref):
    acc = jnp.dot(
        x_ref[...], w_ref[...],
        preferred_element_type=jnp.float32,
        precision=jax.lax.Precision.HIGHEST,
    )
    a = mean_ref.shape[-1]
    mean_ref[...] = (acc[:, :a] + b_ref[...]).astype(mean_ref.dtype)


# --------------------------------------------------------------------------
# One-time parameter preparation (per parameter update, NOT per forward call)
# --------------------------------------------------------------------------
def prepare_actor_params(weight_t, bias, log_std):
    """weight_t: [F, A] (PyTorch Linear weight transposed), bias: [A], log_std: [A].

    Returns (w_pad [F, A_pad] lane-padded for the MXU, b_2d [1, A], std [A], A).
    """
    F, A = weight_t.shape
    A_pad = _round_up(A, LANE)
    w_pad = jnp.pad(weight_t, ((0, 0), (0, A_pad - A))) if A_pad != A else weight_t
    b_2d = bias.reshape(1, A)
    std = jnp.exp(log_std)          # no batch dependence -> computed once here
    return w_pad, b_2d, std, A


# --------------------------------------------------------------------------
# Forward: returns (mean [B, A], std [B, A]) — the parameters of Normal(mean, std)
# --------------------------------------------------------------------------
def actor_forward(features, w_pad, b_2d, std, act_size, *,
                  vmem_tile_budget_bytes=4 * 1024 * 1024,
                  max_rows_per_tile=None):
    B, F = features.shape
    A = act_size
    A_pad = w_pad.shape[1]

    # VMEM-budget-driven batch tile: per-buffer bytes for the x tile plus the
    # out tile, double-buffered by the pipeline.  Sublane-aligned.
    row_bytes = (F + A) * features.dtype.itemsize
    cap = max(SUBLANE,
              (vmem_tile_budget_bytes // (2 * row_bytes)) // SUBLANE * SUBLANE)
    if max_rows_per_tile is not None:
        cap = min(cap, max(SUBLANE, max_rows_per_tile // SUBLANE * SUBLANE))

    if B <= cap:
        # Single full block: block dims equal the full array dims, so no
        # batch padding, no wrapper pad op, no output slice op.
        TB, B_pad, x = B, B, features
    else:
        TB = cap
        B_pad = _round_up(B, TB)
        x = jnp.pad(features, ((0, B_pad - B), (0, 0)))

    grid = (B_pad // TB,)
    mean_full = pl.pallas_call(
        actor_mean_kernel,
        out_shape=jax.ShapeDtypeStruct((B_pad, A), jnp.float32),
        grid_spec=pltpu.PrefetchScalarGridSpec(
            num_scalar_prefetch=0,
            grid=grid,
            in_specs=[
                # batch-tiled activations (pipelined / double-buffered)
                pl.BlockSpec((TB, F), lambda i: (i, 0)),
                # resident weight & bias: constant index map -> single buffer
                pl.BlockSpec((F, A_pad), lambda i: (0, 0),
                             pipeline_mode=pl.Buffered(1)),
                pl.BlockSpec((1, A), lambda i: (0, 0),
                             pipeline_mode=pl.Buffered(1)),
            ],
            out_specs=pl.BlockSpec((TB, A), lambda i: (i, 0)),
        ),
        compiler_params=pltpu.CompilerParams(
            # On v7x with grid >= 2 tiles, CORE_PARALLEL would shard across
            # the two TensorCores; "parallel" is kept for portability.
            dimension_semantics=("parallel",),
            # Explicit limit so the larger tile stays inside v7x's 64 MiB
            # physical VMEM (32 MiB default scoped); trivially fits v5e/v6e.
            vmem_limit_bytes=32 * 1024 * 1024,
        ),
    )(x, w_pad, b_2d)

    mean = mean_full if B_pad == B else mean_full[:B]
    # std = exp(log_std).expand_as(mean): broadcast lazily, no kernel traffic.
    std_b = jnp.broadcast_to(std, (B, A))
    return mean, std_b


# --------------------------------------------------------------------------
# Deterministic init matching nn.Linear's U(-1/sqrt(F), 1/sqrt(F)) scheme
# --------------------------------------------------------------------------
def init_actor_params(key, feature_size, act_size):
    kw, kb = jax.random.split(key)
    bound = 1.0 / jnp.sqrt(jnp.float32(feature_size))
    # PyTorch Linear weight is [A, F]; store transposed [F, A] for the kernel.
    weight_t = jax.random.uniform(
        kw, (feature_size, act_size), jnp.float32, -bound, bound)
    bias = jax.random.uniform(kb, (act_size,), jnp.float32, -bound, bound)
    log_std = jnp.zeros((act_size,), jnp.float32)  # nn.Parameter(torch.zeros(act_size))
    return weight_t, bias, log_std


if __name__ == "__main__":
    key = jax.random.PRNGKey(0)
    k_feat, k_params = jax.random.split(key)

    batch, feature_size, act_size = 2, 32, 8
    features = jax.random.normal(k_feat, (batch, feature_size), jnp.float32)
    weight_t, bias, log_std = init_actor_params(k_params, feature_size, act_size)

    # One-time parameter prep (lane-pad weight + exp(log_std)), then forward.
    w_pad, b_2d, std, A = prepare_actor_params(weight_t, bias, log_std)

    # ---- small-batch (single-block, no-pad, no-slice) path ----------------
    mean, std_b = actor_forward(features, w_pad, b_2d, std, A)
    jax.block_until_ready((mean, std_b))

    ref_mean = features @ weight_t + bias
    ref_std = jnp.broadcast_to(jnp.exp(log_std), ref_mean.shape)
    assert mean.shape == (batch, act_size) and std_b.shape == (batch, act_size)
    assert jnp.allclose(mean, ref_mean, atol=1e-5, rtol=1e-5)
    assert jnp.allclose(std_b, ref_std, atol=1e-6, rtol=1e-6)

    # ---- multi-tile (grid > 1, batch-padded) path, forced small tile ------
    B2 = 20
    feats2 = jax.random.normal(jax.random.PRNGKey(1), (B2, feature_size),
                               jnp.float32)
    mean2, std2 = actor_forward(feats2, w_pad, b_2d, std, A,
                                max_rows_per_tile=8)
    jax.block_until_ready((mean2, std2))
    ref2 = feats2 @ weight_t + bias
    assert mean2.shape == (B2, act_size) and std2.shape == (B2, act_size)
    assert jnp.allclose(mean2, ref2, atol=1e-5, rtol=1e-5)

    print("KERNEL_OK")
</pallas_src>

<mosaic_0001>
module attributes {stable_mosaic.version = 11 : i64} {
  func.func @actor_mean_kernel(%arg0: i32, %arg1: memref<2x32xf32, #tpu.memory_space<vmem>>, %arg2: memref<32x128xf32, #tpu.memory_space<vmem>>, %arg3: memref<1x8xf32, #tpu.memory_space<vmem>>, %arg4: memref<2x8xf32, #tpu.memory_space<vmem>>) attributes {dimension_semantics = [#tpu.dimension_semantics<parallel>], iteration_bounds = array<i64: 1>, scalar_prefetch = 0 : i64, scratch_operands = 0 : i64, tpu.core_type = #tpu.core_type<tc>, window_params = [{transform_indices = @transform_0, window_bounds = array<i64: 2, 32>}, {pipeline_mode = #tpu.pipeline_mode<synchronous>, transform_indices = @transform_1, window_bounds = array<i64: 32, 128>}, {pipeline_mode = #tpu.pipeline_mode<synchronous>, transform_indices = @transform_2, window_bounds = array<i64: 1, 8>}, {transform_indices = @transform_3, window_bounds = array<i64: 2, 8>}]} {
    %c0 = arith.constant 0 : index
    %c0_0 = arith.constant 0 : index
    %0 = vector.load %arg1[%c0, %c0_0] : memref<2x32xf32, #tpu.memory_space<vmem>>, vector<2x32xf32>
    %c0_1 = arith.constant 0 : index
    %c0_2 = arith.constant 0 : index
    %1 = vector.load %arg2[%c0_1, %c0_2] : memref<32x128xf32, #tpu.memory_space<vmem>>, vector<32x128xf32>
    %cst = arith.constant dense<0.000000e+00> : vector<2x128xf32>
    %2 = tpu.matmul %0, %1, %cst {dimension_numbers = #tpu.dot_dimension_numbers<[1], [0], [0], [1], [0, 0, 1, 1], [], []>, precision = #tpu.contract_precision<fp32>} : vector<2x32xf32>, vector<32x128xf32>, vector<2x128xf32> -> vector<2x128xf32>
    %3 = vector.extract_strided_slice %2 {offsets = [0, 0], sizes = [2, 8], strides = [1, 1]} : vector<2x128xf32> to vector<2x8xf32>
    %c0_3 = arith.constant 0 : index
    %c0_4 = arith.constant 0 : index
    %4 = vector.load %arg3[%c0_3, %c0_4] : memref<1x8xf32, #tpu.memory_space<vmem>>, vector<1x8xf32>
    %5 = vector.broadcast %4 : vector<1x8xf32> to vector<2x8xf32>
    %6 = arith.addf %3, %5 : vector<2x8xf32>
    %c0_5 = arith.constant 0 : index
    %c0_6 = arith.constant 0 : index
    %7 = vector.load %arg4[%c0_5, %c0_6] : memref<2x8xf32, #tpu.memory_space<vmem>>, vector<2x8xf32>
    tpu.vector_store %arg4[%c0_5, %c0_6], %6 {strides = array<i32>} : memref<2x8xf32, #tpu.memory_space<vmem>>, vector<2x8xf32>,
    return
  }
  func.func @transform_0(%arg0: i32) -> (i32, i32) {
    %c0_i32 = arith.constant 0 : i32
    %c0_i32_0 = arith.constant 0 : i32
    return %arg0, %c0_i32 : i32, i32
  }
  func.func @transform_1(%arg0: i32) -> (i32, i32) {
    %c0_i32 = arith.constant 0 : i32
    %c0_i32_0 = arith.constant 0 : i32
    %c0_i32_1 = arith.constant 0 : i32
    return %c0_i32, %c0_i32_0 : i32, i32
  }
  func.func @transform_2(%arg0: i32) -> (i32, i32) {
    %c0_i32 = arith.constant 0 : i32
    %c0_i32_0 = arith.constant 0 : i32
    %c0_i32_1 = arith.constant 0 : i32
    return %c0_i32, %c0_i32_0 : i32, i32
  }
  func.func @transform_3(%arg0: i32) -> (i32, i32) {
    %c0_i32 = arith.constant 0 : i32
    %c0_i32_0 = arith.constant 0 : i32
    return %arg0, %c0_i32 : i32, i32
  }
}

</mosaic_0001>

<llo_original>
// kernel: tpu_custom_call.1
$region0: #{tpu_custom_call.1}
  #allocation0 [shape = 'u32[]', space=smem, size = 0x4, offset = 0x4, fixed_abs, tag = 'smem constant byte address 0x4 - core index']
  #allocation1 [shape = 'u32[72,128]{1,0:T(1,128)}', space=vmem, size = 0x9000, scoped, tag = 'internal scratch']
  %s0 = inlined_call_operand.hbm [shape: f32[2,32], index: 0, kind: input, shape index: {}]
  %s1 = inlined_call_operand.hbm [shape: f32[32,128], index: 1, kind: input, shape index: {}]
  %s2 = inlined_call_operand.vmem [shape: f32[1,8], index: 2, kind: input, shape index: {}]
  %s3 = inlined_call_operand.hbm [shape: f32[2,8], index: 3, kind: output, shape index: {}]
  %s4 = sld [smem:[#allocation0]]
  $region30: #{tpu_custom_call.1} parent=0
    _
  %s6 = ssub.s32 1, %s4
  %s7 = scalar_select 0, %s6, %s4
  $region1: #{tpu_custom_call.1} parent=0
    #allocation2 [shape = 'u8[1024]{0}', space=vmem, size = 0x400, scoped, tag = 'input window, operand 0, single buffered']
    #allocation3 [shape = 's32[1]{0}', space=sflag, size = 0x4, scoped, tag = 'scoped memory for tpu_custom_call.1']
    #allocation4 [shape = 's32[1]{0}', space=sflag, size = 0x4, scoped, tag = 'scoped memory for tpu_custom_call.1']
    #allocation5 [shape = 'u8[16384]{0}', space=vmem, size = 0x4000, scoped, tag = 'input window, operand 1, single buffered']
    #allocation6 [shape = 's32[1]{0}', space=sflag, size = 0x4, scoped, tag = 'scoped memory for tpu_custom_call.1']
    #allocation7 [shape = 'u8[1024]{0}', space=vmem, size = 0x400, scoped, tag = 'output window, operand 0, single buffered']
    %8 = vsyncpa [#allocation3], 0
    %9 = vsyncpa [#allocation6], 0
    %10 = vsyncpa [#allocation4], 0
    // Predicated region
    $region2: #{tpu_custom_call.1} parent=1 // pred_check
      _
    $region3: #{tpu_custom_call.1} parent=1 // pred_check_branch
      %12 = sbr.rel (0) target = $region5
    $region4: #{tpu_custom_call.1} parent=1 // pred_region
      %14 = vsyncadd [#allocation3], 0
      %s16 = sshll.u32 %s0, 4
      %s17 = int_to_ptr.hbm [resolvable:$true] %s16
      %s18 = sshll.u32 [#allocation2], 4
      %s19 = int_to_ptr.vmem [resolvable:$true] %s18
      %21 = dma.hbm_to_vmem [thread:$0]  %s17, 32, %s19, [#allocation3]
    $region5: #{tpu_custom_call.1} parent=1 // pred_fallthru
      _
    // Predicated region
    $region6: #{tpu_custom_call.1} parent=1 // pred_check
      _
    $region7: #{tpu_custom_call.1} parent=1 // pred_check_branch
      %23 = sbr.rel (0) target = $region9
    $region8: #{tpu_custom_call.1} parent=1 // pred_region
      %25 = vsyncadd [#allocation6], 0
      %s26 = sshll.u32 %s1, 4
      %s27 = int_to_ptr.hbm [resolvable:$true] %s26
      %s28 = sshll.u32 [#allocation5], 4
      %s29 = int_to_ptr.vmem [resolvable:$true] %s28
      %34 = dma.hbm_to_vmem [thread:$0]  %s27, 512, %s29, [#allocation6], 128, 128, 8
    $region9: #{tpu_custom_call.1} parent=1 // pred_fallthru
      _
    // Predicated region
    $region10: #{tpu_custom_call.1} parent=1 // pred_check
      _
    $region11: #{tpu_custom_call.1} parent=1 // pred_check_branch
      %36 = sbr.rel (0) target = $region13
    $region12: #{tpu_custom_call.1} parent=1 // pred_region
      _
    $region13: #{tpu_custom_call.1} parent=1 // pred_fallthru
      _
    // Predicated region
    $region14: #{tpu_custom_call.1} parent=1 // pred_check
      _
    $region15: #{tpu_custom_call.1} parent=1 // pred_check_branch
      %38 = sbr.rel (0) target = $region17
    $region16: #{tpu_custom_call.1} parent=1 // pred_region
      %40 = dma.done [#allocation3], 32
    $region17: #{tpu_custom_call.1} parent=1 // pred_fallthru
      _
    // Predicated region
    $region18: #{tpu_custom_call.1} parent=1 // pred_check
      _
    $region19: #{tpu_custom_call.1} parent=1 // pred_check_branch
      %42 = sbr.rel (0) target = $region21
    $region20: #{tpu_custom_call.1} parent=1 // pred_region
      %44 = dma.done [#allocation6], 512
    $region21: #{tpu_custom_call.1} parent=1 // pred_fallthru
      _
    %v45 = vld [vmem:[#allocation2] sm:$0x3]
    %v46 = vld [vmem:[#allocation5] sm:$0xff]
    %v47 = vld [vmem:[#allocation5 + $0x8] sm:$0xff]
    %v48 = vld [vmem:[#allocation5 + $0x10] sm:$0xff]
    %v49 = vld [vmem:[#allocation5 + $0x18] sm:$0xff]
    %vm50 = vcmask 261120
    %v52 = vsel %vm50, %v45, 0
    %54 = vmatpush.msra.mxu0 0.0
    %55 = vmatpush.msra.mxu0 0.0
    %56 = vmatpush.msra.mxu0 0.0
    %57 = vmatpush.msra.mxu0 0.0
    %58 = vmatpush.msra.mxu0 0.0
    %59 = vmatpush.msra.mxu0 0.0
    %60 = vmatpush.msra.mxu0 0.0
    %61 = vmatpush.msra.mxu0 0.0
    %62 = vmatpush.msra.mxu0 0.0
    %63 = vmatpush.msra.mxu0 0.0
    %64 = vmatpush.msra.mxu0 0.0
    %65 = vmatpush.msra.mxu0 0.0
    %v66 = vand.u32 %v49, 4294901760
    %67 = vmatpush.msra.mxu0 %v66
    %v68 = vand.u32 %v48, 4294901760
    %69 = vmatpush.msra.mxu0 %v68
    %v70 = vand.u32 %v47, 4294901760
    %71 = vmatpush.msra.mxu0 %v70
    %v72 = vand.u32 %v46, 4294901760
    %73 = vmatpush.msra.mxu0 %v72
    %v74 = vand.u32 %v52, 4294901760
    %v75 = vsub.f32 %v52, %v74
    %v76 = vand.u32 %v75, 4294901760
    %v77 = vsub.f32 %v75, %v76
    %v78 = vand.u32 %v77, 4294901760
    %79 = vmatmul.f32.gmra.mxu0 %v78
    %v80 = vpop.f32.mrf.mxu0
    %v81 = vadd.f32 0.0, %v80
    %82 = vdwg.mxu0
    %83 = vmatpush.msra.mxu0 0.0
    %84 = vmatpush.msra.mxu0 0.0
    %85 = vmatpush.msra.mxu0 0.0
    %86 = vmatpush.msra.mxu0 0.0
    %87 = vmatpush.msra.mxu0 0.0
    %88 = vmatpush.msra.mxu0 0.0
    %89 = vmatpush.msra.mxu0 0.0
    %90 = vmatpush.msra.mxu0 0.0
    %91 = vmatpush.msra.mxu0 0.0
    %92 = vmatpush.msra.mxu0 0.0
    %93 = vmatpush.msra.mxu0 0.0
    %94 = vmatpush.msra.mxu0 0.0
    %v95 = vand.u32 %v49, 4294901760
    %v96 = vsub.f32 %v49, %v95
    %v97 = vand.u32 %v96, 4294901760
    %v98 = vsub.f32 %v96, %v97
    %v99 = vand.u32 %v98, 4294901760
    %100 = vmatpush.msra.mxu0 %v99
    %v101 = vand.u32 %v48, 4294901760
    %v102 = vsub.f32 %v48, %v101
    %v103 = vand.u32 %v102, 4294901760
    %v104 = vsub.f32 %v102, %v103
    %v105 = vand.u32 %v104, 4294901760
    %106 = vmatpush.msra.mxu0 %v105
    %v107 = vand.u32 %v47, 4294901760
    %v108 = vsub.f32 %v47, %v107
    %v109 = vand.u32 %v108, 4294901760
    %v110 = vsub.f32 %v108, %v109
    %v111 = vand.u32 %v110, 4294901760
    %112 = vmatpush.msra.mxu0 %v111
    %v113 = vand.u32 %v46, 4294901760
    %v114 = vsub.f32 %v46, %v113
    %v115 = vand.u32 %v114, 4294901760
    %v116 = vsub.f32 %v114, %v115
    %v117 = vand.u32 %v116, 4294901760
    %118 = vmatpush.msra.mxu0 %v117
    %v119 = vand.u32 %v52, 4294901760
    %120 = vmatmul.f32.gmra.mxu0 %v119
    %v121 = vpop.f32.mrf.mxu0
    %v122 = vadd.f32 %v81, %v121
    %123 = vdwg.mxu0
    %124 = vmatpush.msra.mxu0 0.0
    %125 = vmatpush.msra.mxu0 0.0
    %126 = vmatpush.msra.mxu0 0.0
    %127 = vmatpush.msra.mxu0 0.0
    %128 = vmatpush.msra.mxu0 0.0
    %129 = vmatpush.msra.mxu0 0.0
    %130 = vmatpush.msra.mxu0 0.0
    %131 = vmatpush.msra.mxu0 0.0
    %132 = vmatpush.msra.mxu0 0.0
    %133 = vmatpush.msra.mxu0 0.0
    %134 = vmatpush.msra.mxu0 0.0
    %135 = vmatpush.msra.mxu0 0.0
    %v136 = vand.u32 %v49, 4294901760
    %v137 = vsub.f32 %v49, %v136
    %138 = vmatpush.msra.mxu0 %v137
    %v139 = vand.u32 %v48, 4294901760
    %v140 = vsub.f32 %v48, %v139
    %141 = vmatpush.msra.mxu0 %v140
    %v142 = vand.u32 %v47, 4294901760
    %v143 = vsub.f32 %v47, %v142
    %144 = vmatpush.msra.mxu0 %v143
    %v145 = vand.u32 %v46, 4294901760
    %v146 = vsub.f32 %v46, %v145
    %147 = vmatpush.msra.mxu0 %v146
    %v148 = vand.u32 %v52, 4294901760
    %v149 = vsub.f32 %v52, %v148
    %150 = vmatmul.f32.gmra.mxu0 %v149
    %v151 = vpop.f32.mrf.mxu0
    %v152 = vadd.f32 %v122, %v151
    %153 = vdwg.mxu0
    %154 = vmatpush.msra.mxu0 0.0
    %155 = vmatpush.msra.mxu0 0.0
    %156 = vmatpush.msra.mxu0 0.0
    %157 = vmatpush.msra.mxu0 0.0
    %158 = vmatpush.msra.mxu0 0.0
    %159 = vmatpush.msra.mxu0 0.0
    %160 = vmatpush.msra.mxu0 0.0
    %161 = vmatpush.msra.mxu0 0.0
    %162 = vmatpush.msra.mxu0 0.0
    %163 = vmatpush.msra.mxu0 0.0
    %164 = vmatpush.msra.mxu0 0.0
    %165 = vmatpush.msra.mxu0 0.0
    %v166 = vand.u32 %v49, 4294901760
    %167 = vmatpush.msra.mxu0 %v166
    %v168 = vand.u32 %v48, 4294901760
    %169 = vmatpush.msra.mxu0 %v168
    %v170 = vand.u32 %v47, 4294901760
    %171 = vmatpush.msra.mxu0 %v170
    %v172 = vand.u32 %v46, 4294901760
    %173 = vmatpush.msra.mxu0 %v172
    %v174 = vand.u32 %v52, 4294901760
    %v175 = vsub.f32 %v52, %v174
    %v176 = vand.u32 %v175, 4294901760
    %177 = vmatmul.f32.gmra.mxu0 %v176
    %v178 = vpop.f32.mrf.mxu0
    %v179 = vadd.f32 %v152, %v178
    %180 = vdwg.mxu0
    %181 = vmatpush.msra.mxu0 0.0
    %182 = vmatpush.msra.mxu0 0.0
    %183 = vmatpush.msra.mxu0 0.0
    %184 = vmatpush.msra.mxu0 0.0
    %185 = vmatpush.msra.mxu0 0.0
    %186 = vmatpush.msra.mxu0 0.0
    %187 = vmatpush.msra.mxu0 0.0
    %188 = vmatpush.msra.mxu0 0.0
    %189 = vmatpush.msra.mxu0 0.0
    %190 = vmatpush.msra.mxu0 0.0
    %191 = vmatpush.msra.mxu0 0.0
    %192 = vmatpush.msra.mxu0 0.0
    %v193 = vand.u32 %v49, 4294901760
    %v194 = vsub.f32 %v49, %v193
    %v195 = vand.u32 %v194, 4294901760
    %196 = vmatpush.msra.mxu0 %v195
    %v197 = vand.u32 %v48, 4294901760
    %v198 = vsub.f32 %v48, %v197
    %v199 = vand.u32 %v198, 4294901760
    %200 = vmatpush.msra.mxu0 %v199
    %v201 = vand.u32 %v47, 4294901760
    %v202 = vsub.f32 %v47, %v201
    %v203 = vand.u32 %v202, 4294901760
    %204 = vmatpush.msra.mxu0 %v203
    %v205 = vand.u32 %v46, 4294901760
    %v206 = vsub.f32 %v46, %v205
    %v207 = vand.u32 %v206, 4294901760
    %208 = vmatpush.msra.mxu0 %v207
    %v209 = vand.u32 %v52, 4294901760
    %210 = vmatmul.f32.gmra.mxu0 %v209
    %v211 = vpop.f32.mrf.mxu0
    %v212 = vadd.f32 %v179, %v211
    %213 = vdwg.mxu0
    %214 = vmatpush.msra.mxu0 0.0
    %215 = vmatpush.msra.mxu0 0.0
    %216 = vmatpush.msra.mxu0 0.0
    %217 = vmatpush.msra.mxu0 0.0
    %218 = vmatpush.msra.mxu0 0.0
    %219 = vmatpush.msra.mxu0 0.0
    %220 = vmatpush.msra.mxu0 0.0
    %221 = vmatpush.msra.mxu0 0.0
    %222 = vmatpush.msra.mxu0 0.0
    %223 = vmatpush.msra.mxu0 0.0
    %224 = vmatpush.msra.mxu0 0.0
    %225 = vmatpush.msra.mxu0 0.0
    %v226 = vand.u32 %v49, 4294901760
    %227 = vmatpush.msra.mxu0 %v226
    %v228 = vand.u32 %v48, 4294901760
    %229 = vmatpush.msra.mxu0 %v228
    %v230 = vand.u32 %v47, 4294901760
    %231 = vmatpush.msra.mxu0 %v230
    %v232 = vand.u32 %v46, 4294901760
    %233 = vmatpush.msra.mxu0 %v232
    %v234 = vand.u32 %v52, 4294901760
    %235 = vmatmul.f32.gmra.mxu0 %v234
    %v236 = vpop.f32.mrf.mxu0
    %v237 = vadd.f32 %v212, %v236
    %238 = vdwg.mxu0
    %v239 = vld [vmem:[%s2] sm:$0x1]
    %v241 = vperm.slane %v239, 0
    %v243 = vadd.f32 %v237, %v241
    %vm244 = vcmask 58368
    %245 = vst.msk [vmem:[#allocation7] sm:$0x3] %vm244, %v243
    // Predicated region
    $region22: #{tpu_custom_call.1} parent=1 // pred_check
      _
    $region23: #{tpu_custom_call.1} parent=1 // pred_check_branch
      %247 = sbr.rel (0) target = $region25
    $region24: #{tpu_custom_call.1} parent=1 // pred_region
      %249 = vsyncadd [#allocation4], 0
      %s251 = sshll.u32 [#allocation7], 4
      %s252 = int_to_ptr.vmem [resolvable:$true] %s251
      %s253 = sshll.u32 %s3, 4
      %s254 = int_to_ptr.hbm [resolvable:$true] %s253
      %256 = dma.vmem_to_hbm [thread:$0]  %s252, 32, %s254, [#allocation4]
    $region25: #{tpu_custom_call.1} parent=1 // pred_fallthru
      _
    // Predicated region
    $region26: #{tpu_custom_call.1} parent=1 // pred_check
      _
    $region27: #{tpu_custom_call.1} parent=1 // pred_check_branch
      %258 = sbr.rel (0) target = $region29
    $region28: #{tpu_custom_call.1} parent=1 // pred_region
      %260 = dma.done [#allocation4], 32
    $region29: #{tpu_custom_call.1} parent=1 // pred_fallthru
      _
    %261 = vsyncpa [#allocation3], 1
    %262 = vsyncpa [#allocation6], 1
    %263 = vsyncpa [#allocation4], 1

</llo_original>
